<compile_context>
chip_gen: v6e
topology: v6e:2x2x1
jax: 0.10.0
libtpu: 0.0.40
codegen_flags: <defaults>
</compile_context>

<pallas_src>
import functools
import math

import jax
import jax.numpy as jnp
from jax import lax
from jax.experimental import pallas as pl
from jax.experimental.pallas import tpu as pltpu


_INV_SQRT2 = 0.7071067811865476


def _gelu_exact(x):
    # PyTorch nn.GELU() default: exact erf-based GELU (approximate='none').
    return 0.5 * x * (1.0 + lax.erf(x * jnp.asarray(_INV_SQRT2, x.dtype)))


def _round_up(n, m):
    return ((n + m - 1) // m) * m


def _tile_contrib(x_ref, w1_ref, b1_ref, w2_ref):
    """f32 contribution of one hidden tile: GELU(x @ W1_k + b1_k) @ W2_k."""
    h = jnp.dot(x_ref[...], w1_ref[...], preferred_element_type=jnp.float32)
    h = h + b1_ref[...].astype(jnp.float32)
    h = _gelu_exact(h)                                       # (tm, tk) f32
    return jnp.dot(h.astype(w2_ref.dtype), w2_ref[...],
                   preferred_element_type=jnp.float32)       # (tm, dim_p) f32


def _mlp_kernel_direct(x_ref, w1_ref, b1_ref, w2_ref, b2_ref, o_ref):
    """f32 output: accumulate straight into the VMEM-resident output tile."""
    k = pl.program_id(1)

    @pl.when(k == 0)
    def _init():
        o_ref[...] = jnp.broadcast_to(b2_ref[...], o_ref.shape).astype(o_ref.dtype)

    o_ref[...] += _tile_contrib(x_ref, w1_ref, b1_ref, w2_ref)


def _mlp_kernel_scratch(x_ref, w1_ref, b1_ref, w2_ref, b2_ref, o_ref, acc_ref):
    """Non-f32 stored output: f32 accumulator scratch, cast once at the end."""
    k = pl.program_id(1)

    @pl.when(k == 0)
    def _init():
        acc_ref[...] = jnp.broadcast_to(b2_ref[...].astype(jnp.float32),
                                        acc_ref.shape)

    acc_ref[...] += _tile_contrib(x_ref, w1_ref, b1_ref, w2_ref)

    @pl.when(k == pl.num_programs(1) - 1)
    def _finalize():
        o_ref[...] = acc_ref[...].astype(o_ref.dtype)


def _device_vmem_bytes():
    """Physical VMEM per TensorCore; conservative fallback if query fails."""
    try:
        info = pltpu.get_tpu_info()
        cap = getattr(info, "vmem_capacity_bytes", None)
        if cap:
            return int(cap)
    except Exception:
        pass
    return 64 * 1024 * 1024  # v7x-sized conservative default


@functools.partial(jax.jit, static_argnames=("tm", "tk", "compute_dtype"))
def mlp_layer(x, w1, b1, w2, b2, *, tm=None, tk=None, compute_dtype=None):
    """GELU(x @ W1 + b1) @ W2 + b2, fused.  Returns x's shape and dtype.

    tm / tk: row / hidden tiles (None = auto, device-VMEM aware).
    compute_dtype: e.g. jnp.bfloat16 -> operands streamed in bf16, f32
        accumulation.  None keeps the stored dtype (f32-faithful).
    """
    orig_shape = x.shape
    out_dtype = x.dtype
    dim = orig_shape[-1]
    hidden = w1.shape[1]
    x2d = x.reshape(-1, dim)
    m = x2d.shape[0]

    x_stream_dtype = jnp.dtype(compute_dtype if compute_dtype is not None else x.dtype)
    w_stream_dtype = jnp.dtype(compute_dtype if compute_dtype is not None else w1.dtype)
    # Sublane packing multiple (8 for f32, 16 for bf16, 32 for int8/fp8).
    sub = max(8, 32 // x_stream_dtype.itemsize)

    # ---------------- tile selection -----------------------------------
    dim_p = _round_up(dim, 128)

    tm_req = tm if tm is not None else (512 if x_stream_dtype.itemsize < 4 else 256)
    tm_eff = min(_round_up(tm_req, sub), _round_up(m, sub))
    # Megacore: prefer >= 2 row tiles so both v7x TensorCores get work.
    if _round_up(m, tm_eff) // tm_eff == 1 and tm_eff > 256:
        tm_eff = _round_up(tm_eff // 2, sub)

    tk_req = tk if tk is not None else 512
    tk_eff = min(_round_up(tk_req, 128), _round_up(hidden, 128))

    use_acc = jnp.dtype(out_dtype) != jnp.dtype(jnp.float32)

    def est_bytes(tm_, tk_):
        xb = x_stream_dtype.itemsize
        wb = w_stream_dtype.itemsize
        ob = jnp.dtype(out_dtype).itemsize
        return (2 * tm_ * dim_p * xb                 # x tiles (double buffered)
                + 2 * tm_ * dim_p * ob               # output tiles
                + 2 * dim_p * tk_ * wb               # W1 tiles
                + 2 * tk_ * dim_p * wb               # W2 tiles
                + 2 * tk_ * 4 + 2 * dim_p * 4        # bias tiles
                + (tm_ * dim_p * 4 if use_acc else 0)  # f32 accumulator
                + tm_ * tk_ * 4)                     # GELU intermediate

    budget = _device_vmem_bytes() - (4 << 20)        # headroom for internals
    # Shrink tk, then tm, until the working set fits the device VMEM budget.
    while est_bytes(tm_eff, tk_eff) > budget and tk_eff > 128:
        tk_eff = max(128, ((tk_eff // 2) // 128) * 128)
    while est_bytes(tm_eff, tk_eff) > budget and tm_eff > sub:
        tm_eff = max(sub, _round_up(tm_eff // 2, sub))

    m_p = _round_up(m, tm_eff)
    hid_p = _round_up(hidden, tk_eff)

    # ---------------- cast / pad only when needed -----------------------
    def _cast(a, dt):
        return a if a.dtype == dt else a.astype(dt)

    x_p = _cast(x2d, x_stream_dtype)
    w1_p = _cast(w1, w_stream_dtype)
    w2_p = _cast(w2, w_stream_dtype)
    b1_p = b1.astype(jnp.float32).reshape(1, hidden)
    b2_p = b2.astype(jnp.float32).reshape(1, dim)

    # Zero padding is exact: GELU(0)=0 and zero weight rows/cols contribute
    # nothing to the real outputs; padded rows/cols are sliced off at the end.
    if (m_p, dim_p) != (m, dim):
        x_p = jnp.pad(x_p, ((0, m_p - m), (0, dim_p - dim)))
    if (dim_p, hid_p) != (dim, hidden):
        w1_p = jnp.pad(w1_p, ((0, dim_p - dim), (0, hid_p - hidden)))
        w2_p = jnp.pad(w2_p, ((0, hid_p - hidden), (0, dim_p - dim)))
    if hid_p != hidden:
        b1_p = jnp.pad(b1_p, ((0, 0), (0, hid_p - hidden)))
    if dim_p != dim:
        b2_p = jnp.pad(b2_p, ((0, 0), (0, dim_p - dim)))

    grid = (m_p // tm_eff, hid_p // tk_eff)

    if use_acc:
        kernel = _mlp_kernel_scratch
        scratch = [pltpu.VMEM((tm_eff, dim_p), jnp.float32)]
    else:
        kernel = _mlp_kernel_direct
        scratch = []

    est = est_bytes(tm_eff, tk_eff)
    vmem_limit = int(min(budget, max(32 * 1024 * 1024, est * 5 // 4 + (1 << 20))))

    out = pl.pallas_call(
        kernel,
        out_shape=jax.ShapeDtypeStruct((m_p, dim_p), out_dtype),
        grid_spec=pltpu.PrefetchScalarGridSpec(
            num_scalar_prefetch=0,
            grid=grid,
            in_specs=[
                pl.BlockSpec((tm_eff, dim_p), lambda i, k: (i, 0)),   # x rows
                pl.BlockSpec((dim_p, tk_eff), lambda i, k: (0, k)),   # W1 tile
                pl.BlockSpec((1, tk_eff), lambda i, k: (0, k)),       # b1 tile
                pl.BlockSpec((tk_eff, dim_p), lambda i, k: (k, 0)),   # W2 tile
                pl.BlockSpec((1, dim_p), lambda i, k: (0, 0)),        # b2
            ],
            out_specs=pl.BlockSpec((tm_eff, dim_p), lambda i, k: (i, 0)),
            scratch_shapes=scratch,
        ),
        compiler_params=pltpu.CompilerParams(
            dimension_semantics=("parallel", "arbitrary"),
            vmem_limit_bytes=vmem_limit,
        ),
    )(x_p, w1_p, b1_p, w2_p, b2_p)

    if (m_p, dim_p) != (m, dim):
        out = out[:m, :dim]
    return out.reshape(orig_shape)


def mlp_reference(x, w1, b1, w2, b2):
    hp = jax.lax.Precision.HIGHEST
    h = jnp.dot(x, w1, precision=hp) + b1
    h = _gelu_exact(h)
    return jnp.dot(h, w2, precision=hp) + b2


if __name__ == "__main__":
    # Small, lane-friendly shapes implied by the module (MLP over last dim).
    batch, seq, dim, hidden = 2, 8, 128, 512

    key = jax.random.PRNGKey(0)
    kx, kw1, kb1, kw2, kb2 = jax.random.split(key, 5)

    x = jax.random.normal(kx, (batch, seq, dim), dtype=jnp.float32)
    # Deterministic param init (uniform, roughly nn.Linear scale), math layout.
    w1 = jax.random.uniform(kw1, (dim, hidden), jnp.float32,
                            -1.0 / math.sqrt(dim), 1.0 / math.sqrt(dim))
    b1 = jax.random.uniform(kb1, (hidden,), jnp.float32,
                            -1.0 / math.sqrt(dim), 1.0 / math.sqrt(dim))
    w2 = jax.random.uniform(kw2, (hidden, dim), jnp.float32,
                            -1.0 / math.sqrt(hidden), 1.0 / math.sqrt(hidden))
    b2 = jax.random.uniform(kb2, (dim,), jnp.float32,
                            -1.0 / math.sqrt(hidden), 1.0 / math.sqrt(hidden))

    ref = mlp_reference(x, w1, b1, w2, b2)

    # f32 path: matches the PyTorch module numerics (exact erf GELU, f32 dots).
    out = jax.block_until_ready(mlp_layer(x, w1, b1, w2, b2))
    assert out.shape == x.shape and out.dtype == x.dtype
    assert jnp.allclose(out, ref, atol=2e-4, rtol=2e-4), "f32 kernel mismatch"

    # bf16-MXU path (operands pre-cast in the wrapper, f32 accumulation).
    out_bf16 = jax.block_until_ready(
        mlp_layer(x, w1, b1, w2, b2, compute_dtype=jnp.bfloat16))
    assert bool(jnp.all(jnp.isfinite(out_bf16)))
    assert jnp.allclose(out_bf16, ref, atol=1e-1, rtol=1e-1), "bf16 kernel mismatch"

    print("KERNEL_OK")
</pallas_src>

<mosaic_0001>
module attributes {stable_mosaic.version = 11 : i64} {
  func.func @_mlp_kernel_direct(%arg0: i32, %arg1: i32, %arg2: memref<16x128xf32, #tpu.memory_space<vmem>>, %arg3: memref<128x512xf32, #tpu.memory_space<vmem>>, %arg4: memref<1x512xf32, #tpu.memory_space<vmem>>, %arg5: memref<512x128xf32, #tpu.memory_space<vmem>>, %arg6: memref<1x128xf32, #tpu.memory_space<vmem>>, %arg7: memref<16x128xf32, #tpu.memory_space<vmem>>) attributes {dimension_semantics = [#tpu.dimension_semantics<parallel>, #tpu.dimension_semantics<arbitrary>], iteration_bounds = array<i64: 1, 1>, scalar_prefetch = 0 : i64, scratch_operands = 0 : i64, tpu.core_type = #tpu.core_type<tc>, window_params = [{transform_indices = @transform_0, window_bounds = array<i64: 16, 128>}, {transform_indices = @transform_1, window_bounds = array<i64: 128, 512>}, {transform_indices = @transform_2, window_bounds = array<i64: 1, 512>}, {transform_indices = @transform_3, window_bounds = array<i64: 512, 128>}, {pipeline_mode = #tpu.pipeline_mode<synchronous>, transform_indices = @transform_4, window_bounds = array<i64: 1, 128>}, {transform_indices = @transform_5, window_bounds = array<i64: 16, 128>}]} {
    %c0_i32 = arith.constant 0 : i32
    %0 = arith.cmpi eq, %arg1, %c0_i32 : i32
    %1 = arith.extui %0 : i1 to i32
    %c0_i32_0 = arith.constant 0 : i32
    %2 = arith.cmpi ne, %1, %c0_i32_0 : i32
    scf.if %2 {
      %c0_16 = arith.constant 0 : index
      %c0_17 = arith.constant 0 : index
      %22 = vector.load %arg6[%c0_16, %c0_17] : memref<1x128xf32, #tpu.memory_space<vmem>>, vector<1x128xf32>
      %23 = vector.shape_cast %22 : vector<1x128xf32> to vector<1x128xf32>
      %24 = vector.broadcast %23 : vector<1x128xf32> to vector<16x128xf32>
      %c0_18 = arith.constant 0 : index
      %c0_19 = arith.constant 0 : index
      %25 = vector.load %arg7[%c0_18, %c0_19] : memref<16x128xf32, #tpu.memory_space<vmem>>, vector<16x128xf32>
      tpu.vector_store %arg7[%c0_18, %c0_19], %24 {strides = array<i32>} : memref<16x128xf32, #tpu.memory_space<vmem>>, vector<16x128xf32>,
    } else {
    }
    %c0 = arith.constant 0 : index
    %c0_1 = arith.constant 0 : index
    %3 = vector.load %arg7[%c0, %c0_1] : memref<16x128xf32, #tpu.memory_space<vmem>>, vector<16x128xf32>
    %c0_2 = arith.constant 0 : index
    %c0_3 = arith.constant 0 : index
    %4 = vector.load %arg2[%c0_2, %c0_3] : memref<16x128xf32, #tpu.memory_space<vmem>>, vector<16x128xf32>
    %c0_4 = arith.constant 0 : index
    %c0_5 = arith.constant 0 : index
    %5 = vector.load %arg3[%c0_4, %c0_5] : memref<128x512xf32, #tpu.memory_space<vmem>>, vector<128x512xf32>
    %cst = arith.constant dense<0.000000e+00> : vector<16x512xf32>
    %6 = tpu.matmul %4, %5, %cst {dimension_numbers = #tpu.dot_dimension_numbers<[1], [0], [0], [1], [0, 0, 1, 1], [], []>} : vector<16x128xf32>, vector<128x512xf32>, vector<16x512xf32> -> vector<16x512xf32>
    %c0_6 = arith.constant 0 : index
    %c0_7 = arith.constant 0 : index
    %7 = vector.load %arg4[%c0_6, %c0_7] : memref<1x512xf32, #tpu.memory_space<vmem>>, vector<1x512xf32>
    %8 = vector.broadcast %7 : vector<1x512xf32> to vector<16x512xf32>
    %9 = arith.addf %6, %8 : vector<16x512xf32>
    %cst_8 = arith.constant 5.000000e-01 : f32
    %10 = vector.broadcast %cst_8 : f32 to vector<16x512xf32>
    %11 = arith.mulf %10, %9 : vector<16x512xf32>
    %cst_9 = arith.constant 0.707106769 : f32
    %12 = vector.broadcast %cst_9 : f32 to vector<16x512xf32>
    %13 = arith.mulf %9, %12 : vector<16x512xf32>
    %14 = math.erf %13 : vector<16x512xf32>
    %cst_10 = arith.constant 1.000000e+00 : f32
    %15 = vector.broadcast %cst_10 : f32 to vector<16x512xf32>
    %16 = arith.addf %15, %14 : vector<16x512xf32>
    %17 = arith.mulf %11, %16 : vector<16x512xf32>
    %c0_11 = arith.constant 0 : index
    %c0_12 = arith.constant 0 : index
    %18 = vector.load %arg5[%c0_11, %c0_12] : memref<512x128xf32, #tpu.memory_space<vmem>>, vector<512x128xf32>
    %cst_13 = arith.constant dense<0.000000e+00> : vector<16x128xf32>
    %19 = tpu.matmul %17, %18, %cst_13 {dimension_numbers = #tpu.dot_dimension_numbers<[1], [0], [0], [1], [0, 0, 1, 1], [], []>} : vector<16x512xf32>, vector<512x128xf32>, vector<16x128xf32> -> vector<16x128xf32>
    %20 = arith.addf %3, %19 : vector<16x128xf32>
    %c0_14 = arith.constant 0 : index
    %c0_15 = arith.constant 0 : index
    %21 = vector.load %arg7[%c0_14, %c0_15] : memref<16x128xf32, #tpu.memory_space<vmem>>, vector<16x128xf32>
    tpu.vector_store %arg7[%c0_14, %c0_15], %20 {strides = array<i32>} : memref<16x128xf32, #tpu.memory_space<vmem>>, vector<16x128xf32>,
    return
  }
  func.func @transform_0(%arg0: i32, %arg1: i32) -> (i32, i32) {
    %c0_i32 = arith.constant 0 : i32
    %c0_i32_0 = arith.constant 0 : i32
    return %arg0, %c0_i32 : i32, i32
  }
  func.func @transform_1(%arg0: i32, %arg1: i32) -> (i32, i32) {
    %c0_i32 = arith.constant 0 : i32
    %c0_i32_0 = arith.constant 0 : i32
    return %c0_i32, %arg1 : i32, i32
  }
  func.func @transform_2(%arg0: i32, %arg1: i32) -> (i32, i32) {
    %c0_i32 = arith.constant 0 : i32
    %c0_i32_0 = arith.constant 0 : i32
    return %c0_i32, %arg1 : i32, i32
  }
  func.func @transform_3(%arg0: i32, %arg1: i32) -> (i32, i32) {
    %c0_i32 = arith.constant 0 : i32
    %c0_i32_0 = arith.constant 0 : i32
    return %arg1, %c0_i32 : i32, i32
  }
  func.func @transform_4(%arg0: i32, %arg1: i32) -> (i32, i32) {
    %c0_i32 = arith.constant 0 : i32
    %c0_i32_0 = arith.constant 0 : i32
    %c0_i32_1 = arith.constant 0 : i32
    return %c0_i32, %c0_i32_0 : i32, i32
  }
  func.func @transform_5(%arg0: i32, %arg1: i32) -> (i32, i32) {
    %c0_i32 = arith.constant 0 : i32
    %c0_i32_0 = arith.constant 0 : i32
    return %arg0, %c0_i32 : i32, i32
  }
}

</mosaic_0001>

<llo_original>
// kernel: mlp_layer.1
$region0: #{mlp_layer.1}
  #allocation0 [shape = 'u32[]', space=smem, size = 0x4, offset = 0x4, fixed_abs, tag = 'smem constant byte address 0x4 - core index']
  #allocation1 [shape = 'u32[144,128]{1,0:T(1,128)}', space=vmem, size = 0x12000, scoped, tag = 'internal scratch']
  %s0 = inlined_call_operand.hbm [shape: f32[16,128], index: 0, kind: input, shape index: {}]
  %s1 = inlined_call_operand.hbm [shape: f32[128,512], index: 1, kind: input, shape index: {}]
  %s2 = inlined_call_operand.vmem [shape: f32[1,512], index: 2, kind: input, shape index: {}]
  %s3 = inlined_call_operand.hbm [shape: f32[512,128], index: 3, kind: input, shape index: {}]
  %s4 = inlined_call_operand.vmem [shape: f32[1,128], index: 4, kind: input, shape index: {}]
  %s5 = inlined_call_operand.hbm [shape: f32[16,128], index: 5, kind: output, shape index: {}]
  %s6 = sld [smem:[#allocation0]]
  $region46: #{mlp_layer.1} parent=0
    _
  %s8 = ssub.s32 1, %s6
  %s9 = scalar_select 0, %s8, %s6
  $region1: #{mlp_layer.1} parent=0
    #allocation2 [shape = 'u8[8192]{0}', space=vmem, size = 0x2000, scoped, tag = 'input window, operand 0, single buffered']
    #allocation3 [shape = 's32[1]{0}', space=sflag, size = 0x4, scoped, tag = 'scoped memory for mlp_layer.1']
    #allocation4 [shape = 's32[1]{0}', space=sflag, size = 0x4, scoped, tag = 'scoped memory for mlp_layer.1']
    #allocation5 [shape = 'u8[262144]{0}', space=vmem, size = 0x40000, scoped, tag = 'input window, operand 1, single buffered']
    #allocation6 [shape = 's32[1]{0}', space=sflag, size = 0x4, scoped, tag = 'scoped memory for mlp_layer.1']
    #allocation7 [shape = 'u8[262144]{0}', space=vmem, size = 0x40000, scoped, tag = 'input window, operand 3, single buffered']
    #allocation8 [shape = 'u8[8192]{0}', space=vmem, size = 0x2000, scoped, tag = 'output window, operand 0, single buffered']
    %10 = vsyncpa [#allocation3], 0
    %11 = vsyncpa [#allocation6], 0
    %12 = vsyncpa [#allocation4], 0
    // Predicated region
    $region2: #{mlp_layer.1} parent=1 // pred_check
      _
    $region3: #{mlp_layer.1} parent=1 // pred_check_branch
      %14 = sbr.rel (0) target = $region5
    $region4: #{mlp_layer.1} parent=1 // pred_region
      %s16 = ssub.s32 256, 256
      %17 = vsyncadd [#allocation3], %s16
      %s18 = sshll.u32 [#allocation2], 4
      %s19 = int_to_ptr.vmem [resolvable:$true] %s18
      %24 = dma.hbm_to_vmem [thread:$0]  %s0, 256, %s19, [#allocation3], 128, 128, 8
    $region5: #{mlp_layer.1} parent=1 // pred_fallthru
      _
    // Predicated region
    $region6: #{mlp_layer.1} parent=1 // pred_check
      _
    $region7: #{mlp_layer.1} parent=1 // pred_check_branch
      %26 = sbr.rel (0) target = $region9
    $region8: #{mlp_layer.1} parent=1 // pred_region
      %s28 = ssub.s32 8192, 8192
      %29 = vsyncadd [#allocation6], %s28
      %s30 = sshll.u32 [#allocation5], 4
      %s31 = int_to_ptr.vmem [resolvable:$true] %s30
      %36 = dma.hbm_to_vmem [thread:$0]  %s1, 8192, %s31, [#allocation6], 512, 512, 32
    $region9: #{mlp_layer.1} parent=1 // pred_fallthru
      _
    // Predicated region
    $region10: #{mlp_layer.1} parent=1 // pred_check
      _
    $region11: #{mlp_layer.1} parent=1 // pred_check_branch
      %38 = sbr.rel (0) target = $region13
    $region12: #{mlp_layer.1} parent=1 // pred_region
      _
    $region13: #{mlp_layer.1} parent=1 // pred_fallthru
      _
    // Predicated region
    $region14: #{mlp_layer.1} parent=1 // pred_check
      _
    $region15: #{mlp_layer.1} parent=1 // pred_check_branch
      %40 = sbr.rel (0) target = $region17
    $region16: #{mlp_layer.1} parent=1 // pred_region
      %s42 = ssub.s32 8192, 8192
      %43 = vsyncadd [#allocation6], %s42
      %s44 = sshll.u32 [#allocation7], 4
      %s45 = int_to_ptr.vmem [resolvable:$true] %s44
      %50 = dma.hbm_to_vmem [thread:$0]  %s3, 8192, %s45, [#allocation6], 128, 128, 8
    $region17: #{mlp_layer.1} parent=1 // pred_fallthru
      _
    // Predicated region
    $region18: #{mlp_layer.1} parent=1 // pred_check
      _
    $region19: #{mlp_layer.1} parent=1 // pred_check_branch
      %52 = sbr.rel (0) target = $region21
    $region20: #{mlp_layer.1} parent=1 // pred_region
      _
    $region21: #{mlp_layer.1} parent=1 // pred_fallthru
      _
    // Predicated region
    $region22: #{mlp_layer.1} parent=1 // pred_check
      _
    $region23: #{mlp_layer.1} parent=1 // pred_check_branch
      %54 = sbr.rel (0) target = $region25
    $region24: #{mlp_layer.1} parent=1 // pred_region
      %55 = dma.done [#allocation3], 256
    $region25: #{mlp_layer.1} parent=1 // pred_fallthru
      _
    // Predicated region
    $region26: #{mlp_layer.1} parent=1 // pred_check
      _
    $region27: #{mlp_layer.1} parent=1 // pred_check_branch
      %57 = sbr.rel (0) target = $region29
    $region28: #{mlp_layer.1} parent=1 // pred_region
      %58 = dma.done [#allocation6], 8192
    $region29: #{mlp_layer.1} parent=1 // pred_fallthru
      _
    // Predicated region
    $region30: #{mlp_layer.1} parent=1 // pred_check
      _
    $region31: #{mlp_layer.1} parent=1 // pred_check_branch
      %60 = sbr.rel (0) target = $region33
    $region32: #{mlp_layer.1} parent=1 // pred_region
      %61 = dma.done [#allocation6], 8192
    $region33: #{mlp_layer.1} parent=1 // pred_fallthru
      _
    %p62 = scmp.eq.s32.totalorder 0, 0
    // Predicated region
    $region34: #{mlp_layer.1} parent=1 // pred_check
      %p63 = pneg %p62
    $region35: #{mlp_layer.1} parent=1 // pred_check_branch
      %65 = sbr.rel (%p63) target = $region37
    $region36: #{mlp_layer.1} parent=1 // pred_region
      %v66 = vld [vmem:[%s4] sm:$0x1]
      %v68 = vlaneseq
      %v69 = vshrl.u32 %v68, 7
      %v70 = vsub.s32 0, %v69
      %v71 = vrot.slane %v66, %v70
      %73 = vst [vmem:[#allocation8] sm:$0xff] %v71
      %74 = vst [vmem:[#allocation8 + $0x8] sm:$0xff] %v71
    $region37: #{mlp_layer.1} parent=1 // pred_fallthru
      _
    %v75 = vld [vmem:[#allocation8] sm:$0xff]
    %v76 = vld [vmem:[#allocation8 + $0x8] sm:$0xff]
    %v77 = vld [vmem:[#allocation2] sm:$0xff]
    %v78 = vld [vmem:[#allocation2 + $0x8] sm:$0xff]
    %v79 = vld [vmem:[#allocation5] sm:$0xff]
    %v80 = vld [vmem:[#allocation5 + $0x8] sm:$0xff]
    %v81 = vld [vmem:[#allocation5 + $0x10] sm:$0xff]
    %v82 = vld [vmem:[#allocation5 + $0x18] sm:$0xff]
    %v83 = vld [vmem:[#allocation5 + $0x20] sm:$0xff]
    %v84 = vld [vmem:[#allocation5 + $0x28] sm:$0xff]
    %v85 = vld [vmem:[#allocation5 + $0x30] sm:$0xff]
    %v86 = vld [vmem:[#allocation5 + $0x38] sm:$0xff]
    %v87 = vld [vmem:[#allocation5 + $0x40] sm:$0xff]
    %v88 = vld [vmem:[#allocation5 + $0x48] sm:$0xff]
    %v89 = vld [vmem:[#allocation5 + $0x50] sm:$0xff]
    %v90 = vld [vmem:[#allocation5 + $0x58] sm:$0xff]
    %v91 = vld [vmem:[#allocation5 + $0x60] sm:$0xff]
    %v92 = vld [vmem:[#allocation5 + $0x68] sm:$0xff]
    %v93 = vld [vmem:[#allocation5 + $0x70] sm:$0xff]
    %v94 = vld [vmem:[#allocation5 + $0x78] sm:$0xff]
    %v95 = vld [vmem:[#allocation5 + $0x80] sm:$0xff]
    %v96 = vld [vmem:[#allocation5 + $0x88] sm:$0xff]
    %v97 = vld [vmem:[#allocation5 + $0x90] sm:$0xff]
    %v98 = vld [vmem:[#allocation5 + $0x98] sm:$0xff]
    %v99 = vld [vmem:[#allocation5 + $0xa0] sm:$0xff]
    %v100 = vld [vmem:[#allocation5 + $0xa8] sm:$0xff]
    %v101 = vld [vmem:[#allocation5 + $0xb0] sm:$0xff]
    %v102 = vld [vmem:[#allocation5 + $0xb8] sm:$0xff]
    %v103 = vld [vmem:[#allocation5 + $0xc0] sm:$0xff]
    %v104 = vld [vmem:[#allocation5 + $0xc8] sm:$0xff]
    %v105 = vld [vmem:[#allocation5 + $0xd0] sm:$0xff]
    %v106 = vld [vmem:[#allocation5 + $0xd8] sm:$0xff]
    %v107 = vld [vmem:[#allocation5 + $0xe0] sm:$0xff]
    %v108 = vld [vmem:[#allocation5 + $0xe8] sm:$0xff]
    %v109 = vld [vmem:[#allocation5 + $0xf0] sm:$0xff]
    %v110 = vld [vmem:[#allocation5 + $0xf8] sm:$0xff]
    %v111 = vld [vmem:[#allocation5 + $0x100] sm:$0xff]
    %v112 = vld [vmem:[#allocation5 + $0x108] sm:$0xff]
    %v113 = vld [vmem:[#allocation5 + $0x110] sm:$0xff]
    %v114 = vld [vmem:[#allocation5 + $0x118] sm:$0xff]
    %v115 = vld [vmem:[#allocation5 + $0x120] sm:$0xff]
    %v116 = vld [vmem:[#allocation5 + $0x128] sm:$0xff]
    %v117 = vld [vmem:[#allocation5 + $0x130] sm:$0xff]
    %v118 = vld [vmem:[#allocation5 + $0x138] sm:$0xff]
    %v119 = vld [vmem:[#allocation5 + $0x140] sm:$0xff]
    %v120 = vld [vmem:[#allocation5 + $0x148] sm:$0xff]
    %v121 = vld [vmem:[#allocation5 + $0x150] sm:$0xff]
    %v122 = vld [vmem:[#allocation5 + $0x158] sm:$0xff]
    %v123 = vld [vmem:[#allocation5 + $0x160] sm:$0xff]
    %v124 = vld [vmem:[#allocation5 + $0x168] sm:$0xff]
    %v125 = vld [vmem:[#allocation5 + $0x170] sm:$0xff]
    %v126 = vld [vmem:[#allocation5 + $0x178] sm:$0xff]
    %v127 = vld [vmem:[#allocation5 + $0x180] sm:$0xff]
    %v128 = vld [vmem:[#allocation5 + $0x188] sm:$0xff]
    %v129 = vld [vmem:[#allocation5 + $0x190] sm:$0xff]
    %v130 = vld [vmem:[#allocation5 + $0x198] sm:$0xff]
    %v131 = vld [vmem:[#allocation5 + $0x1a0] sm:$0xff]
    %v132 = vld [vmem:[#allocation5 + $0x1a8] sm:$0xff]
    %v133 = vld [vmem:[#allocation5 + $0x1b0] sm:$0xff]
    %v134 = vld [vmem:[#allocation5 + $0x1b8] sm:$0xff]
    %v135 = vld [vmem:[#allocation5 + $0x1c0] sm:$0xff]
    %v136 = vld [vmem:[#allocation5 + $0x1c8] sm:$0xff]
    %v137 = vld [vmem:[#allocation5 + $0x1d0] sm:$0xff]
    %v138 = vld [vmem:[#allocation5 + $0x1d8] sm:$0xff]
    %v139 = vld [vmem:[#allocation5 + $0x1e0] sm:$0xff]
    %v140 = vld [vmem:[#allocation5 + $0x1e8] sm:$0xff]
    %v141 = vld [vmem:[#allocation5 + $0x1f0] sm:$0xff]
    %v142 = vld [vmem:[#allocation5 + $0x1f8] sm:$0xff]
    %v143 = vld [vmem:[%s2] sm:$0xf]
    %v145 = vlaneseq
    %v146 = vshrl.u32 %v145, 7
    %v147 = vsub.s32 0, %v146
    %v148 = vrot.slane %v143, %v147
    %v149 = vlaneseq
    %v150 = vshrl.u32 %v149, 7
    %v151 = vsub.s32 1, %v150
    %v152 = vrot.slane %v143, %v151
    %v153 = vlaneseq
    %v154 = vshrl.u32 %v153, 7
    %v155 = vsub.s32 2, %v154
    %v156 = vrot.slane %v143, %v155
    %v157 = vlaneseq
    %v158 = vshrl.u32 %v157, 7
    %v159 = vsub.s32 3, %v158
    %v160 = vrot.slane %v143, %v159
    %165 = vmatprep.subr.mxu0 %v140
    %166 = vmatpush1.msra.mxu0 %v139
    %167 = vmatprep.subr.mxu0 %v136
    %168 = vmatpush1.msra.mxu0 %v135
    %169 = vmatprep.subr.mxu0 %v132
    %170 = vmatpush1.msra.mxu0 %v131
    %171 = vmatprep.subr.mxu0 %v128
    %172 = vmatpush1.msra.mxu0 %v127
    %173 = vmatprep.subr.mxu0 %v124
    %174 = vmatpush1.msra.mxu0 %v123
    %175 = vmatprep.subr.mxu0 %v120
    %176 = vmatpush1.msra.mxu0 %v119
    %177 = vmatprep.subr.mxu0 %v116
    %178 = vmatpush1.msra.mxu0 %v115
    %179 = vmatprep.subr.mxu0 %v112
    %180 = vmatpush1.msra.mxu0 %v111
    %181 = vmatprep.subr.mxu0 %v108
    %182 = vmatpush1.msra.mxu0 %v107
    %183 = vmatprep.subr.mxu0 %v104
    %184 = vmatpush1.msra.mxu0 %v103
    %185 = vmatprep.subr.mxu0 %v100
    %186 = vmatpush1.msra.mxu0 %v99
    %187 = vmatprep.subr.mxu0 %v96
    %188 = vmatpush1.msra.mxu0 %v95
    %189 = vmatprep.subr.mxu0 %v92
    %190 = vmatpush1.msra.mxu0 %v91
    %191 = vmatprep.subr.mxu0 %v88
    %192 = vmatpush1.msra.mxu0 %v87
    %193 = vmatprep.subr.mxu0 %v84
    %194 = vmatpush1.msra.mxu0 %v83
    %195 = vmatprep.subr.mxu0 %v80
    %196 = vmatpush1.msra.mxu0 %v79
    %197 = vmatprep.subr.mxu0 0.0
    %198 = vmatpush2.msra.mxu0 0.0
    %199 = vmatprep.subr.mxu0 0.0
    %200 = vmatpush2.msra.mxu0 0.0
    %201 = vmatprep.subr.mxu0 0.0
    %202 = vmatpush2.msra.mxu0 0.0
    %203 = vmatprep.subr.mxu0 0.0
    %204 = vmatpush2.msra.mxu0 0.0
    %205 = vmatprep.subr.mxu0 0.0
    %206 = vmatpush2.msra.mxu0 0.0
    %207 = vmatprep.subr.mxu0 0.0
    %208 = vmatpush2.msra.mxu0 0.0
    %209 = vmatprep.subr.mxu0 0.0
    %210 = vmatpush2.msra.mxu0 0.0
    %211 = vmatprep.subr.mxu0 0.0
    %212 = vmatpush2.msra.mxu0 0.0
    %213 = vmatprep.subr.mxu0 0.0
    %214 = vmatpush2.msra.mxu0 0.0
    %215 = vmatprep.subr.mxu0 0.0
    %216 = vmatpush2.msra.mxu0 0.0
    %217 = vmatprep.subr.mxu0 0.0
    %218 = vmatpush2.msra.mxu0 0.0
    %219 = vmatprep.subr.mxu0 0.0
    %220 = vmatpush2.msra.mxu0 0.0
    %221 = vmatprep.subr.mxu0 0.0
    %222 = vmatpush2.msra.mxu0 0.0
    %223 = vmatprep.subr.mxu0 0.0
    %224 = vmatpush2.msra.mxu0 0.0
    %225 = vmatprep.subr.mxu0 0.0
    %226 = vmatpush2.msra.mxu0 0.0
    %227 = vmatprep.subr.mxu0 0.0
    %228 = vmatpush2.msra.mxu0 0.0
    %229 = vmatprep.mubr.f32.mxu0 0.0
    %230 = vmatmul.mubr.f32.gmra.mxu0 %v77
    %v231 = vpop.f32.mrf.mxu0
    %v232 = vadd.f32 %v148, %v231
    %v233 = vpop.f32.mrf.mxu0
    %v234 = vadd.f32 %v152, %v233
    %235 = vmatprep.mubr.f32.mxu0 0.0
    %236 = vmatmul.mubr.f32.gmra.mxu0 %v78
    %v237 = vpop.f32.mrf.mxu0
    %v238 = vadd.f32 %v148, %v237
    %v239 = vpop.f32.mrf.mxu0
    %v240 = vadd.f32 %v152, %v239
    %241 = vdwg.mxu0
    %242 = vmatprep.subr.mxu0 %v142
    %243 = vmatpush1.msra.mxu0 %v141
    %244 = vmatprep.subr.mxu0 %v138
    %245 = vmatpush1.msra.mxu0 %v137
    %246 = vmatprep.subr.mxu0 %v134
    %247 = vmatpush1.msra.mxu0 %v133
    %248 = vmatprep.subr.mxu0 %v130
    %249 = vmatpush1.msra.mxu0 %v129
    %250 = vmatprep.subr.mxu0 %v126
    %251 = vmatpush1.msra.mxu0 %v125
    %252 = vmatprep.subr.mxu0 %v122
    %253 = vmatpush1.msra.mxu0 %v121
    %254 = vmatprep.subr.mxu0 %v118
    %255 = vmatpush1.msra.mxu0 %v117
    %256 = vmatprep.subr.mxu0 %v114
    %257 = vmatpush1.msra.mxu0 %v113
    %258 = vmatprep.subr.mxu0 %v110
    %259 = vmatpush1.msra.mxu0 %v109
    %260 = vmatprep.subr.mxu0 %v106
    %261 = vmatpush1.msra.mxu0 %v105
    %262 = vmatprep.subr.mxu0 %v102
    %263 = vmatpush1.msra.mxu0 %v101
    %264 = vmatprep.subr.mxu0 %v98
    %265 = vmatpush1.msra.mxu0 %v97
    %266 = vmatprep.subr.mxu0 %v94
    %267 = vmatpush1.msra.mxu0 %v93
    %268 = vmatprep.subr.mxu0 %v90
    %269 = vmatpush1.msra.mxu0 %v89
    %270 = vmatprep.subr.mxu0 %v86
    %271 = vmatpush1.msra.mxu0 %v85
    %272 = vmatprep.subr.mxu0 %v82
    %273 = vmatpush1.msra.mxu0 %v81
    %274 = vmatprep.subr.mxu0 0.0
    %275 = vmatpush2.msra.mxu0 0.0
    %276 = vmatprep.subr.mxu0 0.0
    %277 = vmatpush2.msra.mxu0 0.0
    %278 = vmatprep.subr.mxu0 0.0
    %279 = vmatpush2.msra.mxu0 0.0
    %280 = vmatprep.subr.mxu0 0.0
    %281 = vmatpush2.msra.mxu0 0.0
    %282 = vmatprep.subr.mxu0 0.0
    %283 = vmatpush2.msra.mxu0 0.0
    %284 = vmatprep.subr.mxu0 0.0
    %285 = vmatpush2.msra.mxu0 0.0
    %286 = vmatprep.subr.mxu0 0.0
    %287 = vmatpush2.msra.mxu0 0.0
    %288 = vmatprep.subr.mxu0 0.0
    %289 = vmatpush2.msra.mxu0 0.0
    %290 = vmatprep.subr.mxu0 0.0
    %291 = vmatpush2.msra.mxu0 0.0
    %292 = vmatprep.subr.mxu0 0.0
    %293 = vmatpush2.msra.mxu0 0.0
    %294 = vmatprep.subr.mxu0 0.0
    %295 = vmatpush2.msra.mxu0 0.0
    %296 = vmatprep.subr.mxu0 0.0
    %297 = vmatpush2.msra.mxu0 0.0
    %298 = vmatprep.subr.mxu0 0.0
    %299 = vmatpush2.msra.mxu0 0.0
    %300 = vmatprep.subr.mxu0 0.0
    %301 = vmatpush2.msra.mxu0 0.0
    %302 = vmatprep.subr.mxu0 0.0
    %303 = vmatpush2.msra.mxu0 0.0
    %304 = vmatprep.subr.mxu0 0.0
    %305 = vmatpush2.msra.mxu0 0.0
    %306 = vmatprep.mubr.f32.mxu0 0.0
    %307 = vmatmul.mubr.f32.gmra.mxu0 %v77
    %v308 = vpop.f32.mrf.mxu0
    %v309 = vadd.f32 %v156, %v308
    %v310 = vpop.f32.mrf.mxu0
    %v311 = vadd.f32 %v160, %v310
    %312 = vmatprep.mubr.f32.mxu0 0.0
    %313 = vmatmul.mubr.f32.gmra.mxu0 %v78
    %v314 = vpop.f32.mrf.mxu0
    %v315 = vadd.f32 %v156, %v314
    %v316 = vpop.f32.mrf.mxu0
    %v317 = vadd.f32 %v160, %v316
    %318 = vdwg.mxu0
    %v319 = vmul.f32 %v232, 0.5
    %v320 = vmul.f32 %v234, 0.5
    %v321 = vmul.f32 %v309, 0.5
    %v322 = vmul.f32 %v311, 0.5
    %v323 = vmul.f32 %v238, 0.5
    %v324 = vmul.f32 %v240, 0.5
    %v325 = vmul.f32 %v315, 0.5
    %v326 = vmul.f32 %v317, 0.5
    %v327 = vmul.f32 %v232, 0.70710677
    %v328 = vmul.f32 %v234, 0.70710677
    %v329 = vmul.f32 %v309, 0.70710677
    %v330 = vmul.f32 %v311, 0.70710677
    %v331 = vmul.f32 %v238, 0.70710677
    %v332 = vmul.f32 %v240, 0.70710677
    %v333 = vmul.f32 %v315, 0.70710677
    %v334 = vmul.f32 %v317, 0.70710677
    %v335 = verf.f32.pop %v327
    %v336 = verf.f32.pop %v328
    %v337 = verf.f32.pop %v329
    %v338 = verf.f32.pop %v330
    %v339 = verf.f32.pop %v331
    %v340 = verf.f32.pop %v332
    %v341 = verf.f32.pop %v333
    %v342 = verf.f32.pop %v334
    %v343 = vadd.f32 %v335, 1.0
    %v344 = vadd.f32 %v336, 1.0
    %v345 = vadd.f32 %v337, 1.0
    %v346 = vadd.f32 %v338, 1.0
    %v347 = vadd.f32 %v339, 1.0
    %v348 = vadd.f32 %v340, 1.0
    %v349 = vadd.f32 %v341, 1.0
    %v350 = vadd.f32 %v342, 1.0
    %v351 = vmul.f32 %v319, %v343
    %v352 = vmul.f32 %v320, %v344
    %v353 = vmul.f32 %v321, %v345
    %v354 = vmul.f32 %v322, %v346
    %v355 = vmul.f32 %v323, %v347
    %v356 = vmul.f32 %v324, %v348
    %v357 = vmul.f32 %v325, %v349
    %v358 = vmul.f32 %v326, %v350
    %v359 = vld [vmem:[#allocation7] sm:$0xff]
    %v360 = vld [vmem:[#allocation7 + $0x8] sm:$0xff]
    %v361 = vld [vmem:[#allocation7 + $0x10] sm:$0xff]
    %v362 = vld [vmem:[#allocation7 + $0x18] sm:$0xff]
    %v363 = vld [vmem:[#allocation7 + $0x20] sm:$0xff]
    %v364 = vld [vmem:[#allocation7 + $0x28] sm:$0xff]
    %v365 = vld [vmem:[#allocation7 + $0x30] sm:$0xff]
    %v366 = vld [vmem:[#allocation7 + $0x38] sm:$0xff]
    %v367 = vld [vmem:[#allocation7 + $0x40] sm:$0xff]
    %v368 = vld [vmem:[#allocation7 + $0x48] sm:$0xff]
    %v369 = vld [vmem:[#allocation7 + $0x50] sm:$0xff]
    %v370 = vld [vmem:[#allocation7 + $0x58] sm:$0xff]
    %v371 = vld [vmem:[#allocation7 + $0x60] sm:$0xff]
    %v372 = vld [vmem:[#allocation7 + $0x68] sm:$0xff]
    %v373 = vld [vmem:[#allocation7 + $0x70] sm:$0xff]
    %v374 = vld [vmem:[#allocation7 + $0x78] sm:$0xff]
    %v375 = vld [vmem:[#allocation7 + $0x80] sm:$0xff]
    %v376 = vld [vmem:[#allocation7 + $0x88] sm:$0xff]
    %v377 = vld [vmem:[#allocation7 + $0x90] sm:$0xff]
    %v378 = vld [vmem:[#allocation7 + $0x98] sm:$0xff]
    %v379 = vld [vmem:[#allocation7 + $0xa0] sm:$0xff]
    %v380 = vld [vmem:[#allocation7 + $0xa8] sm:$0xff]
    %v381 = vld [vmem:[#allocation7 + $0xb0] sm:$0xff]
    %v382 = vld [vmem:[#allocation7 + $0xb8] sm:$0xff]
    %v383 = vld [vmem:[#allocation7 + $0xc0] sm:$0xff]
    %v384 = vld [vmem:[#allocation7 + $0xc8] sm:$0xff]
    %v385 = vld [vmem:[#allocation7 + $0xd0] sm:$0xff]
    %v386 = vld [vmem:[#allocation7 + $0xd8] sm:$0xff]
    %v387 = vld [vmem:[#allocation7 + $0xe0] sm:$0xff]
    %v388 = vld [vmem:[#allocation7 + $0xe8] sm:$0xff]
    %v389 = vld [vmem:[#allocation7 + $0xf0] sm:$0xff]
    %v390 = vld [vmem:[#allocation7 + $0xf8] sm:$0xff]
    %v391 = vld [vmem:[#allocation7 + $0x100] sm:$0xff]
    %v392 = vld [vmem:[#allocation7 + $0x108] sm:$0xff]
    %v393 = vld [vmem:[#allocation7 + $0x110] sm:$0xff]
    %v394 = vld [vmem:[#allocation7 + $0x118] sm:$0xff]
    %v395 = vld [vmem:[#allocation7 + $0x120] sm:$0xff]
    %v396 = vld [vmem:[#allocation7 + $0x128] sm:$0xff]
    %v397 = vld [vmem:[#allocation7 + $0x130] sm:$0xff]
    %v398 = vld [vmem:[#allocation7 + $0x138] sm:$0xff]
    %v399 = vld [vmem:[#allocation7 + $0x140] sm:$0xff]
    %v400 = vld [vmem:[#allocation7 + $0x148] sm:$0xff]
    %v401 = vld [vmem:[#allocation7 + $0x150] sm:$0xff]
    %v402 = vld [vmem:[#allocation7 + $0x158] sm:$0xff]
    %v403 = vld [vmem:[#allocation7 + $0x160] sm:$0xff]
    %v404 = vld [vmem:[#allocation7 + $0x168] sm:$0xff]
    %v405 = vld [vmem:[#allocation7 + $0x170] sm:$0xff]
    %v406 = vld [vmem:[#allocation7 + $0x178] sm:$0xff]
    %v407 = vld [vmem:[#allocation7 + $0x180] sm:$0xff]
    %v408 = vld [vmem:[#allocation7 + $0x188] sm:$0xff]
    %v409 = vld [vmem:[#allocation7 + $0x190] sm:$0xff]
    %v410 = vld [vmem:[#allocation7 + $0x198] sm:$0xff]
    %v411 = vld [vmem:[#allocation7 + $0x1a0] sm:$0xff]
    %v412 = vld [vmem:[#allocation7 + $0x1a8] sm:$0xff]
    %v413 = vld [vmem:[#allocation7 + $0x1b0] sm:$0xff]
    %v414 = vld [vmem:[#allocation7 + $0x1b8] sm:$0xff]
    %v415 = vld [vmem:[#allocation7 + $0x1c0] sm:$0xff]
    %v416 = vld [vmem:[#allocation7 + $0x1c8] sm:$0xff]
    %v417 = vld [vmem:[#allocation7 + $0x1d0] sm:$0xff]
    %v418 = vld [vmem:[#allocation7 + $0x1d8] sm:$0xff]
    %v419 = vld [vmem:[#allocation7 + $0x1e0] sm:$0xff]
    %v420 = vld [vmem:[#allocation7 + $0x1e8] sm:$0xff]
    %v421 = vld [vmem:[#allocation7 + $0x1f0] sm:$0xff]
    %v422 = vld [vmem:[#allocation7 + $0x1f8] sm:$0xff]
    %423 = vmatprep.subr.mxu0 0.0
    %424 = vmatpush1.msra.mxu0 %v374
    %425 = vmatprep.subr.mxu0 0.0
    %426 = vmatpush1.msra.mxu0 %v373
    %427 = vmatprep.subr.mxu0 0.0
    %428 = vmatpush1.msra.mxu0 %v372
    %429 = vmatprep.subr.mxu0 0.0
    %430 = vmatpush1.msra.mxu0 %v371
    %431 = vmatprep.subr.mxu0 0.0
    %432 = vmatpush1.msra.mxu0 %v370
    %433 = vmatprep.subr.mxu0 0.0
    %434 = vmatpush1.msra.mxu0 %v369
    %435 = vmatprep.subr.mxu0 0.0
    %436 = vmatpush1.msra.mxu0 %v368
    %437 = vmatprep.subr.mxu0 0.0
    %438 = vmatpush1.msra.mxu0 %v367
    %439 = vmatprep.subr.mxu0 0.0
    %440 = vmatpush1.msra.mxu0 %v366
    %441 = vmatprep.subr.mxu0 0.0
    %442 = vmatpush1.msra.mxu0 %v365
    %443 = vmatprep.subr.mxu0 0.0
    %444 = vmatpush1.msra.mxu0 %v364
    %445 = vmatprep.subr.mxu0 0.0
    %446 = vmatpush1.msra.mxu0 %v363
    %447 = vmatprep.subr.mxu0 0.0
    %448 = vmatpush1.msra.mxu0 %v362
    %449 = vmatprep.subr.mxu0 0.0
    %450 = vmatpush1.msra.mxu0 %v361
    %451 = vmatprep.subr.mxu0 0.0
    %452 = vmatpush1.msra.mxu0 %v360
    %453 = vmatprep.subr.mxu0 0.0
    %454 = vmatpush1.msra.mxu0 %v359
    %455 = vmatprep.subr.mxu0 0.0
    %456 = vmatpush2.msra.mxu0 %v390
    %457 = vmatprep.subr.mxu0 0.0
    %458 = vmatpush2.msra.mxu0 %v389
    %459 = vmatprep.subr.mxu0 0.0
    %460 = vmatpush2.msra.mxu0 %v388
    %461 = vmatprep.subr.mxu0 0.0
    %462 = vmatpush2.msra.mxu0 %v387
    %463 = vmatprep.subr.mxu0 0.0
    %464 = vmatpush2.msra.mxu0 %v386
    %465 = vmatprep.subr.mxu0 0.0
    %466 = vmatpush2.msra.mxu0 %v385
    %467 = vmatprep.subr.mxu0 0.0
    %468 = vmatpush2.msra.mxu0 %v384
    %469 = vmatprep.subr.mxu0 0.0
    %470 = vmatpush2.msra.mxu0 %v383
    %471 = vmatprep.subr.mxu0 0.0
    %472 = vmatpush2.msra.mxu0 %v382
    %473 = vmatprep.subr.mxu0 0.0
    %474 = vmatpush2.msra.mxu0 %v381
    %475 = vmatprep.subr.mxu0 0.0
    %476 = vmatpush2.msra.mxu0 %v380
    %477 = vmatprep.subr.mxu0 0.0
    %478 = vmatpush2.msra.mxu0 %v379
    %479 = vmatprep.subr.mxu0 0.0
    %480 = vmatpush2.msra.mxu0 %v378
    %481 = vmatprep.subr.mxu0 0.0
    %482 = vmatpush2.msra.mxu0 %v377
    %483 = vmatprep.subr.mxu0 0.0
    %484 = vmatpush2.msra.mxu0 %v376
    %485 = vmatprep.subr.mxu0 0.0
    %486 = vmatpush2.msra.mxu0 %v375
    %487 = vmatprep.mubr.f32.mxu0 %v352
    %488 = vmatmul.mubr.f32.gmra.mxu0 %v351
    %v489 = vpop.f32.mrf.mxu0
    %v490 = vadd.f32 0.0, %v489
    %v491 = vpop.f32.mrf.mxu0
    %492 = vmatprep.mubr.f32.mxu0 %v356
    %493 = vmatmul.mubr.f32.gmra.mxu0 %v355
    %v494 = vpop.f32.mrf.mxu0
    %v495 = vadd.f32 0.0, %v494
    %v496 = vpop.f32.mrf.mxu0
    %497 = vdwg.mxu0
    %498 = vmatprep.subr.mxu0 0.0
    %499 = vmatpush1.msra.mxu0 %v406
    %500 = vmatprep.subr.mxu0 0.0
    %501 = vmatpush1.msra.mxu0 %v405
    %502 = vmatprep.subr.mxu0 0.0
    %503 = vmatpush1.msra.mxu0 %v404
    %504 = vmatprep.subr.mxu0 0.0
    %505 = vmatpush1.msra.mxu0 %v403
    %506 = vmatprep.subr.mxu0 0.0
    %507 = vmatpush1.msra.mxu0 %v402
    %508 = vmatprep.subr.mxu0 0.0
    %509 = vmatpush1.msra.mxu0 %v401
    %510 = vmatprep.subr.mxu0 0.0
    %511 = vmatpush1.msra.mxu0 %v400
    %512 = vmatprep.subr.mxu0 0.0
    %513 = vmatpush1.msra.mxu0 %v399
    %514 = vmatprep.subr.mxu0 0.0
    %515 = vmatpush1.msra.mxu0 %v398
    %516 = vmatprep.subr.mxu0 0.0
    %517 = vmatpush1.msra.mxu0 %v397
    %518 = vmatprep.subr.mxu0 0.0
    %519 = vmatpush1.msra.mxu0 %v396
    %520 = vmatprep.subr.mxu0 0.0
    %521 = vmatpush1.msra.mxu0 %v395
    %522 = vmatprep.subr.mxu0 0.0
    %523 = vmatpush1.msra.mxu0 %v394
    %524 = vmatprep.subr.mxu0 0.0
    %525 = vmatpush1.msra.mxu0 %v393
    %526 = vmatprep.subr.mxu0 0.0
    %527 = vmatpush1.msra.mxu0 %v392
    %528 = vmatprep.subr.mxu0 0.0
    %529 = vmatpush1.msra.mxu0 %v391
    %530 = vmatprep.subr.mxu0 0.0
    %531 = vmatpush2.msra.mxu0 %v422
    %532 = vmatprep.subr.mxu0 0.0
    %533 = vmatpush2.msra.mxu0 %v421
    %534 = vmatprep.subr.mxu0 0.0
    %535 = vmatpush2.msra.mxu0 %v420
    %536 = vmatprep.subr.mxu0 0.0
    %537 = vmatpush2.msra.mxu0 %v419
    %538 = vmatprep.subr.mxu0 0.0
    %539 = vmatpush2.msra.mxu0 %v418
    %540 = vmatprep.subr.mxu0 0.0
    %541 = vmatpush2.msra.mxu0 %v417
    %542 = vmatprep.subr.mxu0 0.0
    %543 = vmatpush2.msra.mxu0 %v416
    %544 = vmatprep.subr.mxu0 0.0
    %545 = vmatpush2.msra.mxu0 %v415
    %546 = vmatprep.subr.mxu0 0.0
    %547 = vmatpush2.msra.mxu0 %v414
    %548 = vmatprep.subr.mxu0 0.0
    %549 = vmatpush2.msra.mxu0 %v413
    %550 = vmatprep.subr.mxu0 0.0
    %551 = vmatpush2.msra.mxu0 %v412
    %552 = vmatprep.subr.mxu0 0.0
    %553 = vmatpush2.msra.mxu0 %v411
    %554 = vmatprep.subr.mxu0 0.0
    %555 = vmatpush2.msra.mxu0 %v410
    %556 = vmatprep.subr.mxu0 0.0
    %557 = vmatpush2.msra.mxu0 %v409
    %558 = vmatprep.subr.mxu0 0.0
    %559 = vmatpush2.msra.mxu0 %v408
    %560 = vmatprep.subr.mxu0 0.0
    %561 = vmatpush2.msra.mxu0 %v407
    %562 = vmatprep.mubr.f32.mxu0 %v354
    %563 = vmatmul.mubr.f32.gmra.mxu0 %v353
    %v564 = vpop.f32.mrf.mxu0
    %v565 = vadd.f32 %v490, %v564
    %v566 = vpop.f32.mrf.mxu0
    %567 = vmatprep.mubr.f32.mxu0 %v358
    %568 = vmatmul.mubr.f32.gmra.mxu0 %v357
    %v569 = vpop.f32.mrf.mxu0
    %v570 = vadd.f32 %v495, %v569
    %v571 = vpop.f32.mrf.mxu0
    %572 = vdwg.mxu0
    %v573 = vadd.f32 %v75, %v565
    %v574 = vadd.f32 %v76, %v570
    %575 = vst [vmem:[#allocation8] sm:$0xff] %v573
    %576 = vst [vmem:[#allocation8 + $0x8] sm:$0xff] %v574
    // Predicated region
    $region38: #{mlp_layer.1} parent=1 // pred_check
      _
    $region39: #{mlp_layer.1} parent=1 // pred_check_branch
      %578 = sbr.rel (0) target = $region41
    $region40: #{mlp_layer.1} parent=1 // pred_region
      %s580 = ssub.s32 256, 256
      %581 = vsyncadd [#allocation4], %s580
      %s582 = sshll.u32 [#allocation8], 4
      %s583 = int_to_ptr.vmem [resolvable:$true] %s582
      %588 = dma.vmem_to_hbm [thread:$0]  %s583, 256, %s5, [#allocation4], 128, 128, 8
    $region41: #{mlp_layer.1} parent=1 // pred_fallthru
      _
    // Predicated region
    $region42: #{mlp_layer.1} parent=1 // pred_check
      _
    $region43: #{mlp_layer.1} parent=1 // pred_check_branch
      %590 = sbr.rel (0) target = $region45
    $region44: #{mlp_layer.1} parent=1 // pred_region
      %591 = dma.done [#allocation4], 256
    $region45: #{mlp_layer.1} parent=1 // pred_fallthru
      _
    %592 = vsyncpa [#allocation3], 1
    %593 = vsyncpa [#allocation6], 1
    %594 = vsyncpa [#allocation4], 1

</llo_original>
